<compile_context>
chip_gen: v7x
topology: tpu7x:2x2x1
jax: 0.10.0
libtpu: 0.0.40
codegen_flags: <defaults>
</compile_context>

<pallas_src>
import functools

import jax
import jax.numpy as jnp
from jax import lax
from jax.experimental import pallas as pl
from jax.experimental.pallas import tpu as pltpu


def _classify_kernel(x_ref, wt_ref, b_ref, tw_ref, y_ref,
                     res_ref, nll_ref, wgt_ref,
                     *, num_tags, tile_rows, n_valid_rows, pad_is_zero, training):
    # x_ref : (tile_rows, D)    native dtype
    # wt_ref: (T, D)            native dtype (PyTorch nn.Linear layout: (out, in))
    # b_ref : (T, 1) f32,  tw_ref: (T, 1) f32
    # y_ref : (1, 1, tile_rows) int32
    # res_ref: (1, 1, tile_rows) int32
    # nll_ref / wgt_ref: (1, T, 1) f32  per-tile partial sums
    x = x_ref[...]
    wt = wt_ref[...]

    # scores_T[t, r] = sum_d W[t, d] * x[r, d]  ->  (T, tile_rows), f32 accumulate
    scores = lax.dot_general(wt, x, (((1,), (1,)), ((), ())),
                             preferred_element_type=jnp.float32)
    scores = scores + b_ref[...]                          # (T,1) broadcast over lanes

    if training:
        # log-softmax over the tag (sublane) axis, all f32 (v5e has no bf16 VPU/EUP)
        m = jnp.max(scores, axis=0, keepdims=True)        # (1, tile_rows)
        z = scores - m
        lse = jnp.log(jnp.sum(jnp.exp(z), axis=0, keepdims=True))
        logp = z - lse                                    # (T, tile_rows)
    else:
        logp = scores

    # argmax with torch.max tie-breaking (first index of the max)
    tag_idx = lax.broadcasted_iota(jnp.int32, logp.shape, 0)      # (T, tile_rows)
    if pad_is_zero:
        # torch: max over tag_scores[:, :, 1:] then +1 == masked argmax, no offset
        masked = jnp.where(tag_idx >= 1, logp, -jnp.inf)
        offset = 0
    else:
        # torch: max over the full tag axis, then tag_result.add_(1)
        masked = logp
        offset = 1
    max_val = jnp.max(masked, axis=0, keepdims=True)              # (1, tile_rows)
    tag_f = tag_idx.astype(jnp.float32)
    first_max = jnp.min(jnp.where(masked == max_val, tag_f, float(num_tags)),
                        axis=0, keepdims=True)                    # (1, tile_rows)
    res_ref[0] = first_max.astype(jnp.int32) + offset             # lane-dense store

    # weighted NLL partial sums: sum_r w[y_r] * (-logp[y_r, r])  and  sum_r w[y_r]
    y = y_ref[0]                                                  # (1, tile_rows)
    onehot = (tag_idx == y).astype(jnp.float32)                   # (T, tile_rows)
    # mask rows past the true N (wrapper pads rows up to a multiple of tile_rows)
    row_ids = (pl.program_id(0) * tile_rows
               + lax.broadcasted_iota(jnp.int32, (1, tile_rows), 1))
    valid = (row_ids < n_valid_rows).astype(jnp.float32)          # (1, tile_rows)
    w_y = tw_ref[...] * onehot * valid                            # (T, tile_rows)
    nll_ref[0] = jnp.sum(-(w_y * logp), axis=1, keepdims=True)    # (T, 1)
    wgt_ref[0] = jnp.sum(w_y, axis=1, keepdims=True)              # (T, 1)


def classify_layer_forward(x, y, weight, bias, tag_weights, *,
                           pad_id, training=True, tile_rows=512):
    """x: (B,S,D); y: (B,S) int; weight: (T,D) (PyTorch nn.Linear layout);
    bias, tag_weights: (T,). Returns (tag_result (B,S) int32, loss f32[1])."""
    B, S, D = x.shape
    T = weight.shape[0]
    N = B * S

    itemsize = jnp.dtype(x.dtype).itemsize
    d_lanes = ((D + 127) // 128) * 128
    # cap the double-buffered x tile at ~8 MiB so it also fits v7x's 64 MiB VMEM
    x_budget = 8 * 2**20
    max_rows = max(128, (x_budget // (2 * d_lanes * itemsize)) // 128 * 128)
    tile_rows = min(int(tile_rows), max_rows)
    tile_rows = max(128, (tile_rows // 128) * 128)
    # don't tile past the (row-padded) problem size
    n_rounded = ((N + 127) // 128) * 128
    tile_rows = min(tile_rows, n_rounded)

    num_tiles = (N + tile_rows - 1) // tile_rows
    n_pad = num_tiles * tile_rows

    x2 = jnp.pad(x.reshape(N, D), ((0, n_pad - N), (0, 0)))
    y2 = jnp.pad(y.reshape(N).astype(jnp.int32), (0, n_pad - N))
    y2 = y2.reshape(num_tiles, 1, tile_rows)                 # rows on the lane axis
    wt = weight.astype(x.dtype)                              # MXU inputs share x's dtype
    b2 = bias.reshape(T, 1).astype(jnp.float32)
    tw2 = tag_weights.reshape(T, 1).astype(jnp.float32)

    kernel = functools.partial(
        _classify_kernel, num_tags=T, tile_rows=tile_rows, n_valid_rows=N,
        pad_is_zero=(pad_id == 0), training=training)

    # explicit VMEM budget (double buffers + resident weight/bias/partials), with headroom
    t_sub = ((T + 7) // 8) * 8
    est = (2 * tile_rows * d_lanes * itemsize          # x double buffer
           + 2 * t_sub * d_lanes * itemsize            # weight
           + 4 * 8 * tile_rows * 4                     # y + res buffers
           + 8 * t_sub * 128 * 4)                      # bias / tag_weights / partials
    vmem_limit = int(min(max(4 * est, 16 * 2**20), 32 * 2**20))

    res, nll_part, wgt_part = pl.pallas_call(
        kernel,
        out_shape=(
            jax.ShapeDtypeStruct((num_tiles, 1, tile_rows), jnp.int32),
            jax.ShapeDtypeStruct((num_tiles, T, 1), jnp.float32),
            jax.ShapeDtypeStruct((num_tiles, T, 1), jnp.float32),
        ),
        grid_spec=pltpu.PrefetchScalarGridSpec(
            num_scalar_prefetch=0,
            grid=(num_tiles,),
            in_specs=[
                pl.BlockSpec((tile_rows, D), lambda i: (i, 0)),        # x rows
                # constant index_maps: blocks never change -> stay resident, no re-DMA
                pl.BlockSpec((T, D), lambda i: (0, 0)),                # weight (T, D)
                pl.BlockSpec((T, 1), lambda i: (0, 0)),                # bias
                pl.BlockSpec((T, 1), lambda i: (0, 0)),                # tag weights
                pl.BlockSpec((1, 1, tile_rows), lambda i: (i, 0, 0)),  # labels (lane-dense)
            ],
            out_specs=[
                pl.BlockSpec((1, 1, tile_rows), lambda i: (i, 0, 0)),  # tag_result
                pl.BlockSpec((1, T, 1), lambda i: (i, 0, 0)),          # nll partial sums
                pl.BlockSpec((1, T, 1), lambda i: (i, 0, 0)),          # weight partial sums
            ],
        ),
        compiler_params=pltpu.CompilerParams(
            dimension_semantics=("parallel",),
            vmem_limit_bytes=vmem_limit),
    )(x2, wt, b2, tw2, y2)

    tag_result = res.reshape(-1)[:N].reshape(B, S)
    if training:
        # NLLLoss(weight, reduction='mean') == sum(w[y] * -logp[y]) / sum(w[y])
        # (if every label is the pad id the denominator is 0 -> NaN, same as torch)
        loss = jnp.sum(nll_part) / jnp.sum(wgt_part)
        return tag_result, loss.reshape(1)
    else:
        return tag_result, jnp.zeros((1,), jnp.float32)    # torch.FloatTensor([0.0])


def _reference(x, y, weight, bias, tag_weights, pad_id):
    scores = jnp.einsum("bsd,td->bst", x, weight) + bias
    logp = jax.nn.log_softmax(scores, axis=2)
    if pad_id == 0:
        res = jnp.argmax(logp[:, :, 1:], axis=2) + 1
    else:
        res = jnp.argmax(logp, axis=2) + 1
    T = weight.shape[0]
    logp2 = logp.reshape(-1, T)
    y2 = y.reshape(-1)
    w_y = tag_weights[y2]
    nll = -jnp.take_along_axis(logp2, y2[:, None], axis=1)[:, 0]
    loss = jnp.sum(w_y * nll) / jnp.sum(w_y)
    return res.astype(jnp.int32), loss.reshape(1)


if __name__ == "__main__":
    # ClassifyLayer(input_size=D, num_tags=T, label2id={'<pad>': 0, ...})
    B, S, D, T = 2, 8, 32, 8
    pad_id = 0

    key = jax.random.PRNGKey(0)
    kx, ky, kw, kb = jax.random.split(key, 4)

    x = jax.random.normal(kx, (B, S, D), dtype=jnp.float32)
    y = jax.random.randint(ky, (B, S), 0, T, dtype=jnp.int32)

    # nn.Linear(D, T): weight stored (out_features, in_features) = (T, D)
    bound = 1.0 / (D ** 0.5)
    weight = jax.random.uniform(kw, (T, D), jnp.float32, -bound, bound)
    bias = jax.random.uniform(kb, (T,), jnp.float32, -bound, bound)

    # tag_weights = ones(T); tag_weights[label2id['<pad>']] = 0
    tag_weights = jnp.ones((T,), jnp.float32).at[pad_id].set(0.0)

    tag_result, loss = classify_layer_forward(
        x, y, weight, bias, tag_weights, pad_id=pad_id, training=True)
    jax.block_until_ready((tag_result, loss))

    ref_result, ref_loss = _reference(x, y, weight, bias, tag_weights, pad_id)
    assert tag_result.shape == (B, S) and loss.shape == (1,)
    assert jnp.array_equal(tag_result, ref_result), "tag_result mismatch"
    assert jnp.allclose(loss, ref_loss, rtol=1e-4, atol=1e-5), "loss mismatch"

    print("KERNEL_OK")
</pallas_src>

<mosaic_0001>
module attributes {stable_mosaic.version = 11 : i64} {
  func.func @_classify_kernel(%arg0: i32, %arg1: memref<128x32xf32, #tpu.memory_space<vmem>>, %arg2: memref<8x32xf32, #tpu.memory_space<vmem>>, %arg3: memref<8x1xf32, #tpu.memory_space<vmem>>, %arg4: memref<8x1xf32, #tpu.memory_space<vmem>>, %arg5: memref<1x1x128xi32, #tpu.memory_space<vmem>>, %arg6: memref<1x1x128xi32, #tpu.memory_space<vmem>>, %arg7: memref<1x8x1xf32, #tpu.memory_space<vmem>>, %arg8: memref<1x8x1xf32, #tpu.memory_space<vmem>>) attributes {dimension_semantics = [#tpu.dimension_semantics<parallel>], iteration_bounds = array<i64: 1>, scalar_prefetch = 0 : i64, scratch_operands = 0 : i64, tpu.core_type = #tpu.core_type<tc>, window_params = [{transform_indices = @transform_0, window_bounds = array<i64: 128, 32>}, {pipeline_mode = #tpu.pipeline_mode<synchronous>, transform_indices = @transform_1, window_bounds = array<i64: 8, 32>}, {pipeline_mode = #tpu.pipeline_mode<synchronous>, transform_indices = @transform_2, window_bounds = array<i64: 8, 1>}, {pipeline_mode = #tpu.pipeline_mode<synchronous>, transform_indices = @transform_3, window_bounds = array<i64: 8, 1>}, {transform_indices = @transform_4, window_bounds = array<i64: 1, 1, 128>}, {transform_indices = @transform_5, window_bounds = array<i64: 1, 1, 128>}, {transform_indices = @transform_6, window_bounds = array<i64: 1, 8, 1>}, {transform_indices = @transform_7, window_bounds = array<i64: 1, 8, 1>}]} {
    %c0 = arith.constant 0 : index
    %c0_0 = arith.constant 0 : index
    %0 = vector.load %arg1[%c0, %c0_0] : memref<128x32xf32, #tpu.memory_space<vmem>>, vector<128x32xf32>
    %c0_1 = arith.constant 0 : index
    %c0_2 = arith.constant 0 : index
    %1 = vector.load %arg2[%c0_1, %c0_2] : memref<8x32xf32, #tpu.memory_space<vmem>>, vector<8x32xf32>
    %cst = arith.constant dense<0.000000e+00> : vector<8x128xf32>
    %2 = tpu.matmul %1, %0, %cst {dimension_numbers = #tpu.dot_dimension_numbers<[1], [1], [0], [0], [0, 0, 1, 0], [], []>} : vector<8x32xf32>, vector<128x32xf32>, vector<8x128xf32> -> vector<8x128xf32>
    %c0_3 = arith.constant 0 : index
    %c0_4 = arith.constant 0 : index
    %3 = vector.load %arg3[%c0_3, %c0_4] : memref<8x1xf32, #tpu.memory_space<vmem>>, vector<8x1xf32>
    %4 = vector.broadcast %3 : vector<8x1xf32> to vector<8x128xf32>
    %5 = arith.addf %2, %4 : vector<8x128xf32>
    %cst_5 = arith.constant dense<0xFF800000> : vector<128xf32>
    %6 = vector.multi_reduction <maximumf>, %5, %cst_5 [0] : vector<8x128xf32> to vector<128xf32>
    %7 = vector.shape_cast %6 : vector<128xf32> to vector<1x128xf32>
    %8 = vector.broadcast %7 : vector<1x128xf32> to vector<8x128xf32>
    %9 = arith.subf %5, %8 : vector<8x128xf32>
    %10 = math.exp %9 : vector<8x128xf32>
    %cst_6 = arith.constant dense<0.000000e+00> : vector<128xf32>
    %11 = vector.multi_reduction <add>, %10, %cst_6 [0] : vector<8x128xf32> to vector<128xf32>
    %12 = vector.shape_cast %11 : vector<128xf32> to vector<1x128xf32>
    %13 = math.log %12 : vector<1x128xf32>
    %14 = vector.broadcast %13 : vector<1x128xf32> to vector<8x128xf32>
    %15 = arith.subf %9, %14 : vector<8x128xf32>
    %16 = tpu.iota {dimensions = array<i32: 0>} : vector<8x128xi32>
    %c1_i32 = arith.constant 1 : i32
    %17 = vector.broadcast %c1_i32 : i32 to vector<8x128xi32>
    %18 = arith.cmpi sge, %16, %17 : vector<8x128xi32>
    %cst_7 = arith.constant 0xFF800000 : f32
    %19 = vector.broadcast %cst_7 : f32 to vector<8x128xf32>
    %20 = arith.select %18, %15, %19 : vector<8x128xi1>, vector<8x128xf32>
    %cst_8 = arith.constant dense<0xFF800000> : vector<128xf32>
    %21 = vector.multi_reduction <maximumf>, %20, %cst_8 [0] : vector<8x128xf32> to vector<128xf32>
    %22 = vector.shape_cast %21 : vector<128xf32> to vector<1x128xf32>
    %23 = arith.sitofp %16 : vector<8x128xi32> to vector<8x128xf32>
    %24 = vector.broadcast %22 : vector<1x128xf32> to vector<8x128xf32>
    %25 = arith.cmpf oeq, %20, %24 : vector<8x128xf32>
    %cst_9 = arith.constant 8.000000e+00 : f32
    %26 = vector.broadcast %cst_9 : f32 to vector<8x128xf32>
    %27 = arith.select %25, %23, %26 : vector<8x128xi1>, vector<8x128xf32>
    %cst_10 = arith.constant dense<0x7F800000> : vector<128xf32>
    %28 = vector.multi_reduction <minimumf>, %27, %cst_10 [0] : vector<8x128xf32> to vector<128xf32>
    %29 = vector.shape_cast %28 : vector<128xf32> to vector<1x128xf32>
    %30 = arith.fptosi %29 : vector<1x128xf32> to vector<1x128xi32>
    %c0_i32 = arith.constant 0 : i32
    %31 = vector.broadcast %c0_i32 : i32 to vector<1x128xi32>
    %32 = arith.addi %30, %31 : vector<1x128xi32>
    %c0_11 = arith.constant 0 : index
    %c0_12 = arith.constant 0 : index
    %c0_13 = arith.constant 0 : index
    %33 = vector.load %arg6[%c0_11, %c0_12, %c0_13] : memref<1x1x128xi32, #tpu.memory_space<vmem>>, vector<1x1x128xi32>
    %34 = vector.shape_cast %33 : vector<1x1x128xi32> to vector<1x128xi32>
    %35 = vector.shape_cast %32 : vector<1x128xi32> to vector<1x1x128xi32>
    tpu.vector_store %arg6[%c0_11, %c0_12, %c0_13], %35 {strides = array<i32>} : memref<1x1x128xi32, #tpu.memory_space<vmem>>, vector<1x1x128xi32>,
    %c0_14 = arith.constant 0 : index
    %c0_15 = arith.constant 0 : index
    %c0_16 = arith.constant 0 : index
    %36 = vector.load %arg5[%c0_14, %c0_15, %c0_16] : memref<1x1x128xi32, #tpu.memory_space<vmem>>, vector<1x1x128xi32>
    %37 = vector.shape_cast %36 : vector<1x1x128xi32> to vector<1x128xi32>
    %38 = vector.broadcast %37 : vector<1x128xi32> to vector<8x128xi32>
    %39 = arith.cmpi eq, %16, %38 : vector<8x128xi32>
    %40 = arith.extui %39 : vector<8x128xi1> to vector<8x128xi32>
    %41 = arith.sitofp %40 : vector<8x128xi32> to vector<8x128xf32>
    %c128_i32 = arith.constant 128 : i32
    %42 = arith.muli %arg0, %c128_i32 : i32
    %43 = tpu.iota {dimensions = array<i32: 1>} : vector<1x128xi32>
    %44 = vector.broadcast %42 : i32 to vector<1x128xi32>
    %45 = arith.addi %44, %43 : vector<1x128xi32>
    %c16_i32 = arith.constant 16 : i32
    %46 = vector.broadcast %c16_i32 : i32 to vector<1x128xi32>
    %47 = arith.cmpi slt, %45, %46 : vector<1x128xi32>
    %48 = arith.extui %47 : vector<1x128xi1> to vector<1x128xi32>
    %49 = arith.sitofp %48 : vector<1x128xi32> to vector<1x128xf32>
    %c0_17 = arith.constant 0 : index
    %c0_18 = arith.constant 0 : index
    %50 = vector.load %arg4[%c0_17, %c0_18] : memref<8x1xf32, #tpu.memory_space<vmem>>, vector<8x1xf32>
    %51 = vector.broadcast %50 : vector<8x1xf32> to vector<8x128xf32>
    %52 = arith.mulf %51, %41 : vector<8x128xf32>
    %53 = vector.broadcast %49 : vector<1x128xf32> to vector<8x128xf32>
    %54 = arith.mulf %52, %53 : vector<8x128xf32>
    %55 = arith.mulf %54, %15 : vector<8x128xf32>
    %cst_19 = arith.constant 0.000000e+00 : f32
    %56 = vector.broadcast %cst_19 : f32 to vector<8x128xf32>
    %57 = arith.subf %56, %55 : vector<8x128xf32>
    %cst_20 = arith.constant dense<0.000000e+00> : vector<8xf32>
    %58 = vector.multi_reduction <add>, %57, %cst_20 [1] : vector<8x128xf32> to vector<8xf32>
    %59 = vector.shape_cast %58 : vector<8xf32> to vector<8x1xf32>
    %c0_21 = arith.constant 0 : index
    %c0_22 = arith.constant 0 : index
    %c0_23 = arith.constant 0 : index
    %60 = vector.load %arg7[%c0_21, %c0_22, %c0_23] : memref<1x8x1xf32, #tpu.memory_space<vmem>>, vector<1x8x1xf32>
    %61 = vector.shape_cast %60 : vector<1x8x1xf32> to vector<8x1xf32>
    %62 = vector.shape_cast %59 : vector<8x1xf32> to vector<1x8x1xf32>
    tpu.vector_store %arg7[%c0_21, %c0_22, %c0_23], %62 {strides = array<i32>} : memref<1x8x1xf32, #tpu.memory_space<vmem>>, vector<1x8x1xf32>,
    %cst_24 = arith.constant dense<0.000000e+00> : vector<8xf32>
    %63 = vector.multi_reduction <add>, %54, %cst_24 [1] : vector<8x128xf32> to vector<8xf32>
    %64 = vector.shape_cast %63 : vector<8xf32> to vector<8x1xf32>
    %c0_25 = arith.constant 0 : index
    %c0_26 = arith.constant 0 : index
    %c0_27 = arith.constant 0 : index
    %65 = vector.load %arg8[%c0_25, %c0_26, %c0_27] : memref<1x8x1xf32, #tpu.memory_space<vmem>>, vector<1x8x1xf32>
    %66 = vector.shape_cast %65 : vector<1x8x1xf32> to vector<8x1xf32>
    %67 = vector.shape_cast %64 : vector<8x1xf32> to vector<1x8x1xf32>
    tpu.vector_store %arg8[%c0_25, %c0_26, %c0_27], %67 {strides = array<i32>} : memref<1x8x1xf32, #tpu.memory_space<vmem>>, vector<1x8x1xf32>,
    return
  }
  func.func @transform_0(%arg0: i32) -> (i32, i32) {
    %c0_i32 = arith.constant 0 : i32
    %c0_i32_0 = arith.constant 0 : i32
    return %arg0, %c0_i32 : i32, i32
  }
  func.func @transform_1(%arg0: i32) -> (i32, i32) {
    %c0_i32 = arith.constant 0 : i32
    %c0_i32_0 = arith.constant 0 : i32
    %c0_i32_1 = arith.constant 0 : i32
    return %c0_i32, %c0_i32_0 : i32, i32
  }
  func.func @transform_2(%arg0: i32) -> (i32, i32) {
    %c0_i32 = arith.constant 0 : i32
    %c0_i32_0 = arith.constant 0 : i32
    %c0_i32_1 = arith.constant 0 : i32
    return %c0_i32, %c0_i32_0 : i32, i32
  }
  func.func @transform_3(%arg0: i32) -> (i32, i32) {
    %c0_i32 = arith.constant 0 : i32
    %c0_i32_0 = arith.constant 0 : i32
    %c0_i32_1 = arith.constant 0 : i32
    return %c0_i32, %c0_i32_0 : i32, i32
  }
  func.func @transform_4(%arg0: i32) -> (i32, i32, i32) {
    %c0_i32 = arith.constant 0 : i32
    %c0_i32_0 = arith.constant 0 : i32
    %c0_i32_1 = arith.constant 0 : i32
    return %arg0, %c0_i32, %c0_i32_0 : i32, i32, i32
  }
  func.func @transform_5(%arg0: i32) -> (i32, i32, i32) {
    %c0_i32 = arith.constant 0 : i32
    %c0_i32_0 = arith.constant 0 : i32
    %c0_i32_1 = arith.constant 0 : i32
    return %arg0, %c0_i32, %c0_i32_0 : i32, i32, i32
  }
  func.func @transform_6(%arg0: i32) -> (i32, i32, i32) {
    %c0_i32 = arith.constant 0 : i32
    %c0_i32_0 = arith.constant 0 : i32
    %c0_i32_1 = arith.constant 0 : i32
    return %arg0, %c0_i32, %c0_i32_0 : i32, i32, i32
  }
  func.func @transform_7(%arg0: i32) -> (i32, i32, i32) {
    %c0_i32 = arith.constant 0 : i32
    %c0_i32_0 = arith.constant 0 : i32
    %c0_i32_1 = arith.constant 0 : i32
    return %arg0, %c0_i32, %c0_i32_0 : i32, i32, i32
  }
}

</mosaic_0001>

<llo_original>
// kernel: tpu_custom_call.1
$region0: #{tpu_custom_call.1}
  #allocation0 [shape = 'u32[]', space=smem, size = 0x4, offset = 0x4, fixed_abs, tag = 'smem constant byte address 0x4 - core index']
  #allocation1 [shape = 'u32[144,128]{1,0:T(1,128)}', space=vmem, size = 0x12000, scoped, tag = 'internal scratch']
  %s0 = inlined_call_operand.vmem [shape: f32[128,32], index: 0, kind: input, shape index: {}]
  %s1 = inlined_call_operand.vmem [shape: f32[8,32], index: 1, kind: input, shape index: {}]
  %s2 = inlined_call_operand.vmem [shape: f32[8,1], index: 2, kind: input, shape index: {}]
  %s3 = inlined_call_operand.vmem [shape: f32[8,1], index: 3, kind: input, shape index: {}]
  %s4 = inlined_call_operand.vmem [shape: s32[1,1,128], index: 4, kind: input, shape index: {}]
  %s5 = inlined_call_operand.hbm [shape: s32[1,1,128], index: 5, kind: output, shape index: {0}]
  %s6 = inlined_call_operand.vmem [shape: f32[1,8,1], index: 6, kind: output, shape index: {1}]
  %s7 = inlined_call_operand.vmem [shape: f32[1,8,1], index: 7, kind: output, shape index: {2}]
  %8 = xla_tuple %s5, %s6, %s7
  %s9 = sld [smem:[#allocation0]]
  $region46: #{tpu_custom_call.1} parent=0
    _
  %s11 = ssub.s32 1, %s9
  %s12 = scalar_select 0, %s11, %s9
  $region1: #{tpu_custom_call.1} parent=0
    #allocation2 [shape = 'u8[512]{0}', space=vmem, size = 0x400, scoped, tag = 'output window, operand 0, single buffered']
    #allocation3 [shape = 's32[1]{0}', space=sflag, size = 0x4, scoped, tag = 'scoped memory for tpu_custom_call.1']
    %13 = vsyncpa [#allocation3], 0
    // Predicated region
    $region2: #{tpu_custom_call.1} parent=1 // pred_check
      _
    $region3: #{tpu_custom_call.1} parent=1 // pred_check_branch
      %15 = sbr.rel (0) target = $region5
    $region4: #{tpu_custom_call.1} parent=1 // pred_region
      _
    $region5: #{tpu_custom_call.1} parent=1 // pred_fallthru
      _
    // Predicated region
    $region6: #{tpu_custom_call.1} parent=1 // pred_check
      _
    $region7: #{tpu_custom_call.1} parent=1 // pred_check_branch
      %17 = sbr.rel (0) target = $region9
    $region8: #{tpu_custom_call.1} parent=1 // pred_region
      _
    $region9: #{tpu_custom_call.1} parent=1 // pred_fallthru
      _
    // Predicated region
    $region10: #{tpu_custom_call.1} parent=1 // pred_check
      _
    $region11: #{tpu_custom_call.1} parent=1 // pred_check_branch
      %19 = sbr.rel (0) target = $region13
    $region12: #{tpu_custom_call.1} parent=1 // pred_region
      _
    $region13: #{tpu_custom_call.1} parent=1 // pred_fallthru
      _
    // Predicated region
    $region14: #{tpu_custom_call.1} parent=1 // pred_check
      _
    $region15: #{tpu_custom_call.1} parent=1 // pred_check_branch
      %21 = sbr.rel (0) target = $region17
    $region16: #{tpu_custom_call.1} parent=1 // pred_region
      _
    $region17: #{tpu_custom_call.1} parent=1 // pred_fallthru
      _
    // Predicated region
    $region18: #{tpu_custom_call.1} parent=1 // pred_check
      _
    $region19: #{tpu_custom_call.1} parent=1 // pred_check_branch
      %23 = sbr.rel (0) target = $region21
    $region20: #{tpu_custom_call.1} parent=1 // pred_region
      _
    $region21: #{tpu_custom_call.1} parent=1 // pred_fallthru
      _
    %v24 = vld [vmem:[%s0] sm:$0xff]
    %v25 = vld [vmem:[%s0 + $0x8] sm:$0xff]
    %v26 = vld [vmem:[%s0 + $0x10] sm:$0xff]
    %v27 = vld [vmem:[%s0 + $0x18] sm:$0xff]
    %v28 = vld [vmem:[%s0 + $0x20] sm:$0xff]
    %v29 = vld [vmem:[%s0 + $0x28] sm:$0xff]
    %v30 = vld [vmem:[%s0 + $0x30] sm:$0xff]
    %v31 = vld [vmem:[%s0 + $0x38] sm:$0xff]
    %v32 = vld [vmem:[%s0 + $0x40] sm:$0xff]
    %v33 = vld [vmem:[%s0 + $0x48] sm:$0xff]
    %v34 = vld [vmem:[%s0 + $0x50] sm:$0xff]
    %v35 = vld [vmem:[%s0 + $0x58] sm:$0xff]
    %v36 = vld [vmem:[%s0 + $0x60] sm:$0xff]
    %v37 = vld [vmem:[%s0 + $0x68] sm:$0xff]
    %v38 = vld [vmem:[%s0 + $0x70] sm:$0xff]
    %v39 = vld [vmem:[%s0 + $0x78] sm:$0xff]
    %v40 = vld [vmem:[%s1] sm:$0xff]
    %v41 = vld [vmem:[%s2] sm:$0xff]
    %43 = vset.pattern.permute.xlu0 0
    %44 = vperm.xlu0 %43, %v41
    %v45 = vpop.permute.xlu0 %44
    %vm47 = vcmask 261120
    %v49 = vsel %vm47, %v40, 0
    %v52 = vsel %vm47, %v24, 0
    %v55 = vsel %vm47, %v25, 0
    %v58 = vsel %vm47, %v26, 0
    %v61 = vsel %vm47, %v27, 0
    %v64 = vsel %vm47, %v28, 0
    %v67 = vsel %vm47, %v29, 0
    %v70 = vsel %vm47, %v30, 0
    %v73 = vsel %vm47, %v31, 0
    %v76 = vsel %vm47, %v32, 0
    %v79 = vsel %vm47, %v33, 0
    %v82 = vsel %vm47, %v34, 0
    %v85 = vsel %vm47, %v35, 0
    %v88 = vsel %vm47, %v36, 0
    %v91 = vsel %vm47, %v37, 0
    %v94 = vsel %vm47, %v38, 0
    %v97 = vsel %vm47, %v39, 0
    %99 = vmatprep.subr.mxu0 0.0
    %100 = vmatpush1.xpose.msra.mxu0 %v52
    %101 = vmatprep.subr.mxu0 0.0
    %102 = vmatpush1.xpose.msra.mxu0 %v55
    %103 = vmatprep.subr.mxu0 0.0
    %104 = vmatpush1.xpose.msra.mxu0 %v58
    %105 = vmatprep.subr.mxu0 0.0
    %106 = vmatpush1.xpose.msra.mxu0 %v61
    %107 = vmatprep.subr.mxu0 0.0
    %108 = vmatpush1.xpose.msra.mxu0 %v64
    %109 = vmatprep.subr.mxu0 0.0
    %110 = vmatpush1.xpose.msra.mxu0 %v67
    %111 = vmatprep.subr.mxu0 0.0
    %112 = vmatpush1.xpose.msra.mxu0 %v70
    %113 = vmatprep.subr.mxu0 0.0
    %114 = vmatpush1.xpose.msra.mxu0 %v73
    %115 = vmatprep.subr.mxu0 0.0
    %116 = vmatpush1.xpose.msra.mxu0 %v76
    %117 = vmatprep.subr.mxu0 0.0
    %118 = vmatpush1.xpose.msra.mxu0 %v79
    %119 = vmatprep.subr.mxu0 0.0
    %120 = vmatpush1.xpose.msra.mxu0 %v82
    %121 = vmatprep.subr.mxu0 0.0
    %122 = vmatpush1.xpose.msra.mxu0 %v85
    %123 = vmatprep.subr.mxu0 0.0
    %124 = vmatpush1.xpose.msra.mxu0 %v88
    %125 = vmatprep.subr.mxu0 0.0
    %126 = vmatpush1.xpose.msra.mxu0 %v91
    %127 = vmatprep.subr.mxu0 0.0
    %128 = vmatpush1.xpose.msra.mxu0 %v94
    %129 = vmatprep.subr.mxu0 0.0
    %130 = vmatpush1.xpose.msra.mxu0 %v97
    %131 = vmatprep.subr.mxu0 0.0
    %132 = vmatpush1.xpose.msra.mxu0 0.0
    %133 = vmatprep.subr.mxu0 0.0
    %134 = vmatpush1.xpose.msra.mxu0 0.0
    %135 = vmatprep.subr.mxu0 0.0
    %136 = vmatpush1.xpose.msra.mxu0 0.0
    %137 = vmatprep.subr.mxu0 0.0
    %138 = vmatpush1.xpose.msra.mxu0 0.0
    %139 = vmatprep.subr.mxu0 0.0
    %140 = vmatpush1.xpose.msra.mxu0 0.0
    %141 = vmatprep.subr.mxu0 0.0
    %142 = vmatpush1.xpose.msra.mxu0 0.0
    %143 = vmatprep.subr.mxu0 0.0
    %144 = vmatpush1.xpose.msra.mxu0 0.0
    %145 = vmatprep.subr.mxu0 0.0
    %146 = vmatpush1.xpose.msra.mxu0 0.0
    %147 = vmatprep.subr.mxu0 0.0
    %148 = vmatpush1.xpose.msra.mxu0 0.0
    %149 = vmatprep.subr.mxu0 0.0
    %150 = vmatpush1.xpose.msra.mxu0 0.0
    %151 = vmatprep.subr.mxu0 0.0
    %152 = vmatpush1.xpose.msra.mxu0 0.0
    %153 = vmatprep.subr.mxu0 0.0
    %154 = vmatpush1.xpose.msra.mxu0 0.0
    %155 = vmatprep.subr.mxu0 0.0
    %156 = vmatpush1.xpose.msra.mxu0 0.0
    %157 = vmatprep.subr.mxu0 0.0
    %158 = vmatpush1.xpose.msra.mxu0 0.0
    %159 = vmatprep.subr.mxu0 0.0
    %160 = vmatpush1.xpose.msra.mxu0 0.0
    %161 = vmatprep.subr.mxu0 0.0
    %162 = vmatpush1.xpose.msra.mxu0 0.0
    %163 = vmatprep.mubr.f32.mxu0 0.0
    %164 = vmatmul.mubr.f32.gmra.mrb[0].mxu0 %v49
    %v165 = vpop.f32.mrb[0].mxu0
    %v166 = vadd.f32 %v45, %v165
    %v167 = vpop.f32.mrb[0].mxu0
    %168 = vdwg.mxu0
    %v169 = vrot.slane %v166, 4
    %v170 = vmax.f32 %v166, %v169
    %v171 = vrot.slane %v170, 2
    %v172 = vmax.f32 %v170, %v171
    %v173 = vrot.slane %v172, 1
    %v174 = vmax.f32 %v172, %v173
    %v175 = vsub.f32 %v166, %v174
    %v176 = vmul.f32 %v175, 1.442695
    %v177 = vpow.pop %v176
    %v178 = vrot.slane %v177, 4
    %v179 = vadd.f32 %v177, %v178
    %v180 = vrot.slane %v179, 2
    %v181 = vadd.f32 %v179, %v180
    %v182 = vrot.slane %v181, 1
    %v183 = vadd.f32 %v181, %v182
    %v184 = vlog2.pop %v183
    %v185 = vmul.f32 %v184, 0.6931472
    %v186 = vsub.f32 %v175, %v185
    %v187 = vlaneseq
    %v188 = vshrl.u32 %v187, 7
    %vm189 = vcmp.ge.s32.totalorder %v188, 1
    %v190 = vsel %vm189, %v186, -inf
    %v191 = vrot.slane %v190, 4
    %v192 = vmax.f32 %v190, %v191
    %v193 = vrot.slane %v192, 2
    %v194 = vmax.f32 %v192, %v193
    %v195 = vrot.slane %v194, 1
    %v196 = vmax.f32 %v194, %v195
    %v197 = vcvt.s32.f32 %v188
    %vm198 = vcmp.eq.f32.partialorder %v190, %v196
    %v199 = vsel %vm198, %v197, 8.0
    %v200 = vrot.slane %v199, 4
    %v201 = vmin.f32 %v199, %v200
    %v202 = vrot.slane %v201, 2
    %v203 = vmin.f32 %v201, %v202
    %v204 = vrot.slane %v203, 1
    %v205 = vmin.f32 %v203, %v204
    %v206 = vcvt.f32.s32.to.zero.pseudo %v205
    %207 = vst [vmem:[#allocation2] sm:$0x1] %v206
    %v208 = vld [vmem:[%s4] sm:$0x1]
    %v209 = vlaneseq
    %v210 = vshrl.u32 %v209, 7
    %v211 = vsub.s32 0, %v210
    %v212 = vrot.slane %v208, %v211
    %vm213 = vcmp.eq.s32.totalorder %v188, %v212
    %v214 = vsel %vm213, 1, 0
    %v215 = vcvt.s32.f32 %v214
    %s216 = smul.u32 0, 128
    %v217 = vlaneseq
    %v218 = vand.u32 %v217, 127
    %v219 = vstv %s216
    %v220 = vadd.s32 %v219, %v218
    %vm221 = vcmp.lt.s32.totalorder %v220, 16
    %v222 = vsel %vm221, 1, 0
    %v223 = vcvt.s32.f32 %v222
    %v224 = vld [vmem:[%s3] sm:$0xff]
    %226 = vset.pattern.permute.xlu0 0
    %227 = vperm.xlu0 %226, %v224
    %v228 = vpop.permute.xlu0 %227
    %v230 = vmul.f32 %v228, %v215
    %v231 = vmul.f32 %v230, %v223
    %v232 = vmul.f32 %v231, %v186
    %v233 = vsub.f32 0.0, %v232
    %234 = vadd.xlane.f32.xlu0 %v233
    %v235 = vpop.xlane.xlu0 %234
    %vm236 = vcmask 7168
    %237 = vst.msk [vmem:[%s6] sm:$0xff] %vm236, %v235
    %238 = vadd.xlane.f32.xlu0 %v231
    %v239 = vpop.xlane.xlu0 %238
    %240 = vst.msk [vmem:[%s7] sm:$0xff] %vm236, %v239
    // Predicated region
    $region22: #{tpu_custom_call.1} parent=1 // pred_check
      _
    $region23: #{tpu_custom_call.1} parent=1 // pred_check_branch
      %242 = sbr.rel (0) target = $region25
    $region24: #{tpu_custom_call.1} parent=1 // pred_region
      %s244 = ssub.s32 16, 16
      %245 = vsyncadd [#allocation3], %s244
      %s247 = sshll.u32 [#allocation2], 4
      %s248 = int_to_ptr.vmem [resolvable:$true] %s247
      %250 = dma.vmem_to_hbm [thread:$0]  %s248, 16, %s5, [#allocation3]
    $region25: #{tpu_custom_call.1} parent=1 // pred_fallthru
      _
    // Predicated region
    $region26: #{tpu_custom_call.1} parent=1 // pred_check
      _
    $region27: #{tpu_custom_call.1} parent=1 // pred_check_branch
      %252 = sbr.rel (0) target = $region29
    $region28: #{tpu_custom_call.1} parent=1 // pred_region
      _
    $region29: #{tpu_custom_call.1} parent=1 // pred_fallthru
      _
    // Predicated region
    $region30: #{tpu_custom_call.1} parent=1 // pred_check
      _
    $region31: #{tpu_custom_call.1} parent=1 // pred_check_branch
      %254 = sbr.rel (0) target = $region33
    $region32: #{tpu_custom_call.1} parent=1 // pred_region
      _
    $region33: #{tpu_custom_call.1} parent=1 // pred_fallthru
      _
    // Predicated region
    $region34: #{tpu_custom_call.1} parent=1 // pred_check
      _
    $region35: #{tpu_custom_call.1} parent=1 // pred_check_branch
      %256 = sbr.rel (0) target = $region37
    $region36: #{tpu_custom_call.1} parent=1 // pred_region
      %257 = dma.done [#allocation3], 16
    $region37: #{tpu_custom_call.1} parent=1 // pred_fallthru
      _
    // Predicated region
    $region38: #{tpu_custom_call.1} parent=1 // pred_check
      _
    $region39: #{tpu_custom_call.1} parent=1 // pred_check_branch
      %259 = sbr.rel (0) target = $region41
    $region40: #{tpu_custom_call.1} parent=1 // pred_region
      _
    $region41: #{tpu_custom_call.1} parent=1 // pred_fallthru
      _
    // Predicated region
    $region42: #{tpu_custom_call.1} parent=1 // pred_check
      _
    $region43: #{tpu_custom_call.1} parent=1 // pred_check_branch
      %261 = sbr.rel (0) target = $region45
    $region44: #{tpu_custom_call.1} parent=1 // pred_region
      _
    $region45: #{tpu_custom_call.1} parent=1 // pred_fallthru
      _
    %262 = vsyncpa [#allocation3], 1

</llo_original>
